<compile_context>
chip_gen: v7x
topology: tpu7x:2x2x1
jax: 0.10.0
libtpu: 0.0.40
codegen_flags: <defaults>
</compile_context>

<pallas_src>
import functools

import numpy as np
import jax
import jax.numpy as jnp
from jax.experimental import pallas as pl
from jax.experimental.pallas import tpu as pltpu


def _pka_kernel(*refs, k, has_prev, use_roll):
    """Per-batch-element fused kernel-weighting + progressive-update kernel.

    Inputs (blocks, leading batch dim of 1):
      data [1,C,H,W], kernels [1,k*k,H,W]
      (update only) prev_max [1,1,H,W], prev_sum_r [1,C,H,W], prev_sum_w [1,1,H,W]
    Outputs:
      sum_r [1,C,H,W] f32, sum_w [1,1,H,W] f32, max_w [1,1,H,W] f32
    Scratch (only when use_roll=False):
      pad [C, H+2r, W+2r] f32 zero-padded data plane.
    """
    n_in = 5 if has_prev else 2
    sum_r_ref, sum_w_ref, max_ref = refs[n_in:n_in + 3]
    pad_ref = None if use_roll else refs[n_in + 3]
    if has_prev:
        data_ref, kern_ref, pmax_ref, psum_r_ref, psum_w_ref = refs[:n_in]
    else:
        data_ref, kern_ref = refs[:n_in]

    _, C, H, W = data_ref.shape
    k2 = k * k
    r = k // 2

    # Cast once (hoisted out of all tap loops); no-ops for f32 inputs.
    data_f32 = data_ref[0].astype(jnp.float32)     # [C, H, W]
    kern_f32 = kern_ref[0].astype(jnp.float32)     # [k2, H, W]

    # Per-pixel running max over the k*k taps (reuses the cast slab).
    kmax = kern_f32[0]
    for t in range(1, k2):
        kmax = jnp.maximum(kmax, kern_f32[t])

    if has_prev:
        prev_max = pmax_ref[0, 0]
        new_max = jnp.maximum(kmax, prev_max)
        # Fused progressive rescale: seed the value accumulator with the
        # rescaled previous sums (no output read-modify-write).
        scaler = jnp.exp(prev_max - new_max)
        acc = psum_r_ref[0] * scaler[None]          # [C, H, W] f32
        sum_w = psum_w_ref[0, 0] * scaler           # [H, W]    f32
    else:
        new_max = kmax
        acc = jnp.zeros((C, H, W), jnp.float32)
        sum_w = jnp.zeros((H, W), jnp.float32)
    max_ref[0, 0] = new_max

    if use_roll:
        # Aligned fast path: zero padding of the data outside the image is
        # realized with full-plane XLU rotations plus boundary masks built once
        # from iota planes, so every load / FMA stays full-vreg aligned.
        row_idx = jax.lax.broadcasted_iota(jnp.int32, (H, W), 0)
        col_idx = jax.lax.broadcasted_iota(jnp.int32, (H, W), 1)
        row_ok, col_ok = [], []
        for d in range(k):
            s = d - r
            row_ok.append(None if s == 0 else (row_idx >= -s) & (row_idx < H - s))
            col_ok.append(None if s == 0 else (col_idx >= -s) & (col_idx < W - s))

        for dy in range(k):
            sy = dy - r
            d_row = data_f32 if sy == 0 else pltpu.roll(data_f32, (-sy) % H, 1)
            for dx in range(k):
                sx = dx - r
                t = dy * k + dx
                w_tap = jnp.exp(kern_f32[t] - new_max)        # EUP
                sum_w = sum_w + w_tap                         # all taps count
                shifted = d_row if sx == 0 else pltpu.roll(d_row, (-sx) % W, 2)
                mask = row_ok[dy]
                if col_ok[dx] is not None:
                    mask = col_ok[dx] if mask is None else (mask & col_ok[dx])
                w_d = w_tap if mask is None else jnp.where(mask, w_tap, 0.0)
                acc = acc + shifted * w_d[None]
    else:
        # Generic path (spatial dims not (8,128)-dense): zero-pad the data ONCE
        # into a VMEM scratch, then per tap do a sub-window load, one exp and
        # one FMA into the full-plane value accumulator (no per-tap stores).
        pad_ref[...] = jnp.zeros((C, H + 2 * r, W + 2 * r), jnp.float32)
        pad_ref[:, r:r + H, r:r + W] = data_f32
        for dy in range(k):
            for dx in range(k):
                t = dy * k + dx
                w_tap = jnp.exp(kern_f32[t] - new_max)
                sum_w = sum_w + w_tap
                shifted = pad_ref[:, dy:dy + H, dx:dx + W]    # [C, H, W]
                acc = acc + shifted * w_tap[None]

    # Single lane-dense store per output block.
    sum_r_ref[0] = acc
    sum_w_ref[0, 0] = sum_w


def _vmem_limit_bytes():
    """Generation-aware scoped-VMEM budget: ~75% of physical capacity."""
    try:
        cap = int(pltpu.get_tpu_info().vmem_capacity_bytes)
        return max(32 * 1024 * 1024, (cap * 3) // 4)
    except Exception:
        return 64 * 1024 * 1024


def _kernel_weighting(data, kernels, k, prev=None):
    """Runs the fused Pallas kernel over the batch grid.

    prev is None for the initialization call, or (sum_r, sum_w, max_w) (all f32)
    for a progressive update (fused rescale + accumulate, with buffer donation).
    """
    bs, C, H, W = data.shape
    k2 = kernels.shape[1]
    r = k // 2
    use_roll = (H % 8 == 0) and (W % 128 == 0)

    data_spec = pl.BlockSpec((1, C, H, W), lambda b: (b, 0, 0, 0))
    kern_spec = pl.BlockSpec((1, k2, H, W), lambda b: (b, 0, 0, 0))
    one_spec = pl.BlockSpec((1, 1, H, W), lambda b: (b, 0, 0, 0))

    out_shape = (
        jax.ShapeDtypeStruct((bs, C, H, W), jnp.float32),   # sum_r
        jax.ShapeDtypeStruct((bs, 1, H, W), jnp.float32),   # sum_w
        jax.ShapeDtypeStruct((bs, 1, H, W), jnp.float32),   # max_w
    )
    out_specs = (data_spec, one_spec, one_spec)

    scratch_shapes = []
    if not use_roll:
        scratch_shapes.append(pltpu.VMEM((C, H + 2 * r, W + 2 * r), jnp.float32))

    # Advisory cost model for the XLA scheduler.
    flops = 2 * bs * C * k2 * H * W + 2 * bs * k2 * H * W
    transcendentals = bs * k2 * H * W
    bytes_accessed = (int(data.size) * data.dtype.itemsize
                      + int(kernels.size) * kernels.dtype.itemsize
                      + bs * (C + 2) * H * W * 4)            # outputs

    has_prev = prev is not None
    kernel = functools.partial(_pka_kernel, k=k, has_prev=has_prev,
                               use_roll=use_roll)
    if has_prev:
        prev_sum_r, prev_sum_w, prev_max = prev
        in_specs = [data_spec, kern_spec, one_spec, data_spec, one_spec]
        args = (data, kernels, prev_max, prev_sum_r, prev_sum_w)
        # Fused in-place progressive update: donate the running accumulators.
        aliases = {2: 2, 3: 0, 4: 1}
        flops += 3 * bs * (C + 2) * H * W
        transcendentals += bs * H * W
        bytes_accessed += bs * (C + 2) * H * W * 4            # prev accumulators
    else:
        in_specs = [data_spec, kern_spec]
        args = (data, kernels)
        aliases = {}

    return pl.pallas_call(
        kernel,
        out_shape=out_shape,
        grid=(bs,),
        in_specs=in_specs,
        out_specs=out_specs,
        scratch_shapes=tuple(scratch_shapes),
        input_output_aliases=aliases,
        compiler_params=pltpu.CompilerParams(
            dimension_semantics=("parallel",),        # shard batch across TCs
            vmem_limit_bytes=_vmem_limit_bytes(),     # generation-aware budget
        ),
        cost_estimate=pl.CostEstimate(
            flops=flops,
            transcendentals=transcendentals,
            bytes_accessed=bytes_accessed,
        ),
    )(*args)


def progressive_kernel_apply(data, kernels, sum_r=None, sum_w=None, max_w=None,
                             splat=False):
    """JAX/Pallas equivalent of ProgressiveKernelApply.forward (splat=False)."""
    if splat:
        # TODO(synk): splat=True needs the Scatter2Gather kernel transposition;
        # only the gather path (splat=False) is implemented here.
        raise NotImplementedError("splat=True not implemented")

    bs, k2, h, w = kernels.shape
    k = int(round(np.sqrt(k2)))
    assert k * k == k2, "kernels second dim must be a perfect square"

    if sum_r is None:
        if sum_w is not None or max_w is not None:
            raise RuntimeError("all of sum_r, sum_w, max_w should be none")
        return _kernel_weighting(data, kernels, k, prev=None)

    prev = (jnp.asarray(sum_r, jnp.float32),
            jnp.asarray(sum_w, jnp.float32),
            jnp.asarray(max_w, jnp.float32))
    return _kernel_weighting(data, kernels, k, prev=prev)


# ----------------------- pure-JAX reference for checking -----------------------
def _ref_kernel_weighting(data, wexp, k):
    bs, C, H, W = data.shape
    r = k // 2
    padded = jnp.pad(data, ((0, 0), (0, 0), (r, r), (r, r)))
    acc = jnp.zeros_like(data)
    for dy in range(k):
        for dx in range(k):
            acc = acc + padded[:, :, dy:dy + H, dx:dx + W] * wexp[:, dy * k + dx][:, None]
    sum_w = jnp.sum(wexp, axis=1, keepdims=True)
    return acc, sum_w


def _ref_forward(data, kernels, sum_r, sum_w, max_w):
    bs, k2, h, w = kernels.shape
    k = int(round(np.sqrt(k2)))
    kmax = jnp.max(kernels, axis=1, keepdims=True)
    if sum_r is None:
        max_w = kmax
        wexp = jnp.exp(kernels - max_w)
        sum_r, sum_w = _ref_kernel_weighting(data, wexp, k)
        return sum_r, sum_w, max_w
    new_max = jnp.maximum(kmax, max_w)
    scaler = jnp.exp(max_w - new_max)
    sum_r = sum_r * scaler
    sum_w = sum_w * scaler
    max_w = new_max
    wexp = jnp.exp(kernels - max_w)
    nr, nw = _ref_kernel_weighting(data, wexp, k)
    return sum_r + nr, sum_w + nw, max_w


if __name__ == "__main__":
    def _run_case(key, bs, chans, h, w, k, scale):
        k0, k1, k2_, k3 = jax.random.split(key, 4)
        data0 = jax.random.normal(k0, (bs, chans, h, w), dtype=jnp.float32)
        kern0 = jax.random.normal(k1, (bs, k * k, h, w), dtype=jnp.float32)
        data1 = jax.random.normal(k2_, (bs, chans, h, w), dtype=jnp.float32)
        kern1 = scale * jax.random.normal(k3, (bs, k * k, h, w), dtype=jnp.float32)

        # Initialization call, then one progressive (fused, in-place) update.
        s_r, s_w, m_w = progressive_kernel_apply(data0, kern0, None, None, None)
        s_r, s_w, m_w = progressive_kernel_apply(data1, kern1, s_r, s_w, m_w)
        jax.block_until_ready((s_r, s_w, m_w))

        r_r, r_w, r_m = _ref_forward(data0, kern0, None, None, None)
        r_r, r_w, r_m = _ref_forward(data1, kern1, r_r, r_w, r_m)

        np.testing.assert_allclose(np.asarray(s_r), np.asarray(r_r), rtol=1e-5, atol=1e-5)
        np.testing.assert_allclose(np.asarray(s_w), np.asarray(r_w), rtol=1e-5, atol=1e-5)
        np.testing.assert_allclose(np.asarray(m_w), np.asarray(r_m), rtol=1e-5, atol=1e-5)

    root = jax.random.PRNGKey(0)
    key_a, key_b = jax.random.split(root)
    # Unaligned spatial dims (NCHW, 16x16) -> padded-scratch path.
    _run_case(key_a, bs=2, chans=4, h=16, w=16, k=3, scale=2.0)
    # Lane/sublane-dense dims (8x128) -> pltpu.roll fast path, larger kernel.
    _run_case(key_b, bs=1, chans=3, h=8, w=128, k=5, scale=2.0)

    print("KERNEL_OK")
</pallas_src>

<mosaic_0001>
module attributes {stable_mosaic.version = 11 : i64} {
  func.func @_pka_kernel(%arg0: i32, %arg1: memref<1x4x16x16xf32, #tpu.memory_space<vmem>>, %arg2: memref<1x9x16x16xf32, #tpu.memory_space<vmem>>, %arg3: memref<1x4x16x16xf32, #tpu.memory_space<vmem>>, %arg4: memref<1x1x16x16xf32, #tpu.memory_space<vmem>>, %arg5: memref<1x1x16x16xf32, #tpu.memory_space<vmem>>, %arg6: memref<4x18x18xf32, #tpu.memory_space<vmem>>) attributes {dimension_semantics = [#tpu.dimension_semantics<parallel>], iteration_bounds = array<i64: 2>, scalar_prefetch = 0 : i64, scratch_operands = 1 : i64, tpu.core_type = #tpu.core_type<tc>, window_params = [{transform_indices = @transform_0, window_bounds = array<i64: 1, 4, 16, 16>}, {transform_indices = @transform_1, window_bounds = array<i64: 1, 9, 16, 16>}, {transform_indices = @transform_2, window_bounds = array<i64: 1, 4, 16, 16>}, {transform_indices = @transform_3, window_bounds = array<i64: 1, 1, 16, 16>}, {transform_indices = @transform_4, window_bounds = array<i64: 1, 1, 16, 16>}]} {
    %c0 = arith.constant 0 : index
    %c0_0 = arith.constant 0 : index
    %c0_1 = arith.constant 0 : index
    %c0_2 = arith.constant 0 : index
    %0 = vector.load %arg1[%c0, %c0_0, %c0_1, %c0_2] : memref<1x4x16x16xf32, #tpu.memory_space<vmem>>, vector<1x4x16x16xf32>
    %1 = vector.shape_cast %0 : vector<1x4x16x16xf32> to vector<4x16x16xf32>
    %c0_3 = arith.constant 0 : index
    %c0_4 = arith.constant 0 : index
    %c0_5 = arith.constant 0 : index
    %c0_6 = arith.constant 0 : index
    %2 = vector.load %arg2[%c0_3, %c0_4, %c0_5, %c0_6] : memref<1x9x16x16xf32, #tpu.memory_space<vmem>>, vector<1x9x16x16xf32>
    %3 = vector.shape_cast %2 : vector<1x9x16x16xf32> to vector<9x16x16xf32>
    %4 = vector.extract_strided_slice %3 {offsets = [0, 0, 0], sizes = [1, 16, 16], strides = [1, 1, 1]} : vector<9x16x16xf32> to vector<1x16x16xf32>
    %5 = vector.shape_cast %4 : vector<1x16x16xf32> to vector<16x16xf32>
    %6 = vector.extract_strided_slice %3 {offsets = [1, 0, 0], sizes = [1, 16, 16], strides = [1, 1, 1]} : vector<9x16x16xf32> to vector<1x16x16xf32>
    %7 = vector.shape_cast %6 : vector<1x16x16xf32> to vector<16x16xf32>
    %8 = arith.maximumf %5, %7 : vector<16x16xf32>
    %9 = vector.extract_strided_slice %3 {offsets = [2, 0, 0], sizes = [1, 16, 16], strides = [1, 1, 1]} : vector<9x16x16xf32> to vector<1x16x16xf32>
    %10 = vector.shape_cast %9 : vector<1x16x16xf32> to vector<16x16xf32>
    %11 = arith.maximumf %8, %10 : vector<16x16xf32>
    %12 = vector.extract_strided_slice %3 {offsets = [3, 0, 0], sizes = [1, 16, 16], strides = [1, 1, 1]} : vector<9x16x16xf32> to vector<1x16x16xf32>
    %13 = vector.shape_cast %12 : vector<1x16x16xf32> to vector<16x16xf32>
    %14 = arith.maximumf %11, %13 : vector<16x16xf32>
    %15 = vector.extract_strided_slice %3 {offsets = [4, 0, 0], sizes = [1, 16, 16], strides = [1, 1, 1]} : vector<9x16x16xf32> to vector<1x16x16xf32>
    %16 = vector.shape_cast %15 : vector<1x16x16xf32> to vector<16x16xf32>
    %17 = arith.maximumf %14, %16 : vector<16x16xf32>
    %18 = vector.extract_strided_slice %3 {offsets = [5, 0, 0], sizes = [1, 16, 16], strides = [1, 1, 1]} : vector<9x16x16xf32> to vector<1x16x16xf32>
    %19 = vector.shape_cast %18 : vector<1x16x16xf32> to vector<16x16xf32>
    %20 = arith.maximumf %17, %19 : vector<16x16xf32>
    %21 = vector.extract_strided_slice %3 {offsets = [6, 0, 0], sizes = [1, 16, 16], strides = [1, 1, 1]} : vector<9x16x16xf32> to vector<1x16x16xf32>
    %22 = vector.shape_cast %21 : vector<1x16x16xf32> to vector<16x16xf32>
    %23 = arith.maximumf %20, %22 : vector<16x16xf32>
    %24 = vector.extract_strided_slice %3 {offsets = [7, 0, 0], sizes = [1, 16, 16], strides = [1, 1, 1]} : vector<9x16x16xf32> to vector<1x16x16xf32>
    %25 = vector.shape_cast %24 : vector<1x16x16xf32> to vector<16x16xf32>
    %26 = arith.maximumf %23, %25 : vector<16x16xf32>
    %27 = vector.extract_strided_slice %3 {offsets = [8, 0, 0], sizes = [1, 16, 16], strides = [1, 1, 1]} : vector<9x16x16xf32> to vector<1x16x16xf32>
    %28 = vector.shape_cast %27 : vector<1x16x16xf32> to vector<16x16xf32>
    %29 = arith.maximumf %26, %28 : vector<16x16xf32>
    %cst = arith.constant 0.000000e+00 : f32
    %30 = vector.broadcast %cst : f32 to vector<4x16x16xf32>
    %cst_7 = arith.constant 0.000000e+00 : f32
    %31 = vector.broadcast %cst_7 : f32 to vector<16x16xf32>
    %c0_8 = arith.constant 0 : index
    %c0_9 = arith.constant 0 : index
    %c0_10 = arith.constant 0 : index
    %c0_11 = arith.constant 0 : index
    %32 = vector.load %arg5[%c0_8, %c0_9, %c0_10, %c0_11] : memref<1x1x16x16xf32, #tpu.memory_space<vmem>>, vector<1x1x16x16xf32>
    %33 = vector.shape_cast %32 : vector<1x1x16x16xf32> to vector<16x16xf32>
    %34 = vector.shape_cast %29 : vector<16x16xf32> to vector<1x1x16x16xf32>
    tpu.vector_store %arg5[%c0_8, %c0_9, %c0_10, %c0_11], %34 {strides = array<i32>} : memref<1x1x16x16xf32, #tpu.memory_space<vmem>>, vector<1x1x16x16xf32>,
    %cst_12 = arith.constant 0.000000e+00 : f32
    %35 = vector.broadcast %cst_12 : f32 to vector<4x18x18xf32>
    %c0_13 = arith.constant 0 : index
    %c0_14 = arith.constant 0 : index
    %c0_15 = arith.constant 0 : index
    %36 = vector.load %arg6[%c0_13, %c0_14, %c0_15] : memref<4x18x18xf32, #tpu.memory_space<vmem>>, vector<4x18x18xf32>
    tpu.vector_store %arg6[%c0_13, %c0_14, %c0_15], %35 {strides = array<i32>} : memref<4x18x18xf32, #tpu.memory_space<vmem>>, vector<4x18x18xf32>,
    %c0_16 = arith.constant 0 : index
    %c1 = arith.constant 1 : index
    %c1_17 = arith.constant 1 : index
    %37 = vector.load %arg6[%c0_16, %c1, %c1_17] : memref<4x18x18xf32, #tpu.memory_space<vmem>>, vector<4x16x16xf32>
    tpu.vector_store %arg6[%c0_16, %c1, %c1_17], %1 {strides = array<i32>} : memref<4x18x18xf32, #tpu.memory_space<vmem>>, vector<4x16x16xf32>,
    %38 = vector.extract_strided_slice %3 {offsets = [0, 0, 0], sizes = [1, 16, 16], strides = [1, 1, 1]} : vector<9x16x16xf32> to vector<1x16x16xf32>
    %39 = vector.shape_cast %38 : vector<1x16x16xf32> to vector<16x16xf32>
    %40 = arith.subf %39, %29 : vector<16x16xf32>
    %41 = math.exp %40 : vector<16x16xf32>
    %42 = arith.addf %31, %41 : vector<16x16xf32>
    %c0_18 = arith.constant 0 : index
    %c0_19 = arith.constant 0 : index
    %c0_20 = arith.constant 0 : index
    %43 = vector.load %arg6[%c0_18, %c0_19, %c0_20] : memref<4x18x18xf32, #tpu.memory_space<vmem>>, vector<4x16x16xf32>
    %44 = vector.shape_cast %41 : vector<16x16xf32> to vector<1x16x16xf32>
    %45 = vector.broadcast %44 : vector<1x16x16xf32> to vector<4x16x16xf32>
    %46 = arith.mulf %43, %45 : vector<4x16x16xf32>
    %47 = arith.addf %30, %46 : vector<4x16x16xf32>
    %48 = vector.extract_strided_slice %3 {offsets = [1, 0, 0], sizes = [1, 16, 16], strides = [1, 1, 1]} : vector<9x16x16xf32> to vector<1x16x16xf32>
    %49 = vector.shape_cast %48 : vector<1x16x16xf32> to vector<16x16xf32>
    %50 = arith.subf %49, %29 : vector<16x16xf32>
    %51 = math.exp %50 : vector<16x16xf32>
    %52 = arith.addf %42, %51 : vector<16x16xf32>
    %c0_21 = arith.constant 0 : index
    %c0_22 = arith.constant 0 : index
    %c1_23 = arith.constant 1 : index
    %53 = vector.load %arg6[%c0_21, %c0_22, %c1_23] : memref<4x18x18xf32, #tpu.memory_space<vmem>>, vector<4x16x16xf32>
    %54 = vector.shape_cast %51 : vector<16x16xf32> to vector<1x16x16xf32>
    %55 = vector.broadcast %54 : vector<1x16x16xf32> to vector<4x16x16xf32>
    %56 = arith.mulf %53, %55 : vector<4x16x16xf32>
    %57 = arith.addf %47, %56 : vector<4x16x16xf32>
    %58 = vector.extract_strided_slice %3 {offsets = [2, 0, 0], sizes = [1, 16, 16], strides = [1, 1, 1]} : vector<9x16x16xf32> to vector<1x16x16xf32>
    %59 = vector.shape_cast %58 : vector<1x16x16xf32> to vector<16x16xf32>
    %60 = arith.subf %59, %29 : vector<16x16xf32>
    %61 = math.exp %60 : vector<16x16xf32>
    %62 = arith.addf %52, %61 : vector<16x16xf32>
    %c0_24 = arith.constant 0 : index
    %c0_25 = arith.constant 0 : index
    %c2 = arith.constant 2 : index
    %63 = vector.load %arg6[%c0_24, %c0_25, %c2] : memref<4x18x18xf32, #tpu.memory_space<vmem>>, vector<4x16x16xf32>
    %64 = vector.shape_cast %61 : vector<16x16xf32> to vector<1x16x16xf32>
    %65 = vector.broadcast %64 : vector<1x16x16xf32> to vector<4x16x16xf32>
    %66 = arith.mulf %63, %65 : vector<4x16x16xf32>
    %67 = arith.addf %57, %66 : vector<4x16x16xf32>
    %68 = vector.extract_strided_slice %3 {offsets = [3, 0, 0], sizes = [1, 16, 16], strides = [1, 1, 1]} : vector<9x16x16xf32> to vector<1x16x16xf32>
    %69 = vector.shape_cast %68 : vector<1x16x16xf32> to vector<16x16xf32>
    %70 = arith.subf %69, %29 : vector<16x16xf32>
    %71 = math.exp %70 : vector<16x16xf32>
    %72 = arith.addf %62, %71 : vector<16x16xf32>
    %c0_26 = arith.constant 0 : index
    %c1_27 = arith.constant 1 : index
    %c0_28 = arith.constant 0 : index
    %73 = vector.load %arg6[%c0_26, %c1_27, %c0_28] : memref<4x18x18xf32, #tpu.memory_space<vmem>>, vector<4x16x16xf32>
    %74 = vector.shape_cast %71 : vector<16x16xf32> to vector<1x16x16xf32>
    %75 = vector.broadcast %74 : vector<1x16x16xf32> to vector<4x16x16xf32>
    %76 = arith.mulf %73, %75 : vector<4x16x16xf32>
    %77 = arith.addf %67, %76 : vector<4x16x16xf32>
    %78 = vector.extract_strided_slice %3 {offsets = [4, 0, 0], sizes = [1, 16, 16], strides = [1, 1, 1]} : vector<9x16x16xf32> to vector<1x16x16xf32>
    %79 = vector.shape_cast %78 : vector<1x16x16xf32> to vector<16x16xf32>
    %80 = arith.subf %79, %29 : vector<16x16xf32>
    %81 = math.exp %80 : vector<16x16xf32>
    %82 = arith.addf %72, %81 : vector<16x16xf32>
    %c0_29 = arith.constant 0 : index
    %c1_30 = arith.constant 1 : index
    %c1_31 = arith.constant 1 : index
    %83 = vector.load %arg6[%c0_29, %c1_30, %c1_31] : memref<4x18x18xf32, #tpu.memory_space<vmem>>, vector<4x16x16xf32>
    %84 = vector.shape_cast %81 : vector<16x16xf32> to vector<1x16x16xf32>
    %85 = vector.broadcast %84 : vector<1x16x16xf32> to vector<4x16x16xf32>
    %86 = arith.mulf %83, %85 : vector<4x16x16xf32>
    %87 = arith.addf %77, %86 : vector<4x16x16xf32>
    %88 = vector.extract_strided_slice %3 {offsets = [5, 0, 0], sizes = [1, 16, 16], strides = [1, 1, 1]} : vector<9x16x16xf32> to vector<1x16x16xf32>
    %89 = vector.shape_cast %88 : vector<1x16x16xf32> to vector<16x16xf32>
    %90 = arith.subf %89, %29 : vector<16x16xf32>
    %91 = math.exp %90 : vector<16x16xf32>
    %92 = arith.addf %82, %91 : vector<16x16xf32>
    %c0_32 = arith.constant 0 : index
    %c1_33 = arith.constant 1 : index
    %c2_34 = arith.constant 2 : index
    %93 = vector.load %arg6[%c0_32, %c1_33, %c2_34] : memref<4x18x18xf32, #tpu.memory_space<vmem>>, vector<4x16x16xf32>
    %94 = vector.shape_cast %91 : vector<16x16xf32> to vector<1x16x16xf32>
    %95 = vector.broadcast %94 : vector<1x16x16xf32> to vector<4x16x16xf32>
    %96 = arith.mulf %93, %95 : vector<4x16x16xf32>
    %97 = arith.addf %87, %96 : vector<4x16x16xf32>
    %98 = vector.extract_strided_slice %3 {offsets = [6, 0, 0], sizes = [1, 16, 16], strides = [1, 1, 1]} : vector<9x16x16xf32> to vector<1x16x16xf32>
    %99 = vector.shape_cast %98 : vector<1x16x16xf32> to vector<16x16xf32>
    %100 = arith.subf %99, %29 : vector<16x16xf32>
    %101 = math.exp %100 : vector<16x16xf32>
    %102 = arith.addf %92, %101 : vector<16x16xf32>
    %c0_35 = arith.constant 0 : index
    %c2_36 = arith.constant 2 : index
    %c0_37 = arith.constant 0 : index
    %103 = vector.load %arg6[%c0_35, %c2_36, %c0_37] : memref<4x18x18xf32, #tpu.memory_space<vmem>>, vector<4x16x16xf32>
    %104 = vector.shape_cast %101 : vector<16x16xf32> to vector<1x16x16xf32>
    %105 = vector.broadcast %104 : vector<1x16x16xf32> to vector<4x16x16xf32>
    %106 = arith.mulf %103, %105 : vector<4x16x16xf32>
    %107 = arith.addf %97, %106 : vector<4x16x16xf32>
    %108 = vector.extract_strided_slice %3 {offsets = [7, 0, 0], sizes = [1, 16, 16], strides = [1, 1, 1]} : vector<9x16x16xf32> to vector<1x16x16xf32>
    %109 = vector.shape_cast %108 : vector<1x16x16xf32> to vector<16x16xf32>
    %110 = arith.subf %109, %29 : vector<16x16xf32>
    %111 = math.exp %110 : vector<16x16xf32>
    %112 = arith.addf %102, %111 : vector<16x16xf32>
    %c0_38 = arith.constant 0 : index
    %c2_39 = arith.constant 2 : index
    %c1_40 = arith.constant 1 : index
    %113 = vector.load %arg6[%c0_38, %c2_39, %c1_40] : memref<4x18x18xf32, #tpu.memory_space<vmem>>, vector<4x16x16xf32>
    %114 = vector.shape_cast %111 : vector<16x16xf32> to vector<1x16x16xf32>
    %115 = vector.broadcast %114 : vector<1x16x16xf32> to vector<4x16x16xf32>
    %116 = arith.mulf %113, %115 : vector<4x16x16xf32>
    %117 = arith.addf %107, %116 : vector<4x16x16xf32>
    %118 = vector.extract_strided_slice %3 {offsets = [8, 0, 0], sizes = [1, 16, 16], strides = [1, 1, 1]} : vector<9x16x16xf32> to vector<1x16x16xf32>
    %119 = vector.shape_cast %118 : vector<1x16x16xf32> to vector<16x16xf32>
    %120 = arith.subf %119, %29 : vector<16x16xf32>
    %121 = math.exp %120 : vector<16x16xf32>
    %122 = arith.addf %112, %121 : vector<16x16xf32>
    %c0_41 = arith.constant 0 : index
    %c2_42 = arith.constant 2 : index
    %c2_43 = arith.constant 2 : index
    %123 = vector.load %arg6[%c0_41, %c2_42, %c2_43] : memref<4x18x18xf32, #tpu.memory_space<vmem>>, vector<4x16x16xf32>
    %124 = vector.shape_cast %121 : vector<16x16xf32> to vector<1x16x16xf32>
    %125 = vector.broadcast %124 : vector<1x16x16xf32> to vector<4x16x16xf32>
    %126 = arith.mulf %123, %125 : vector<4x16x16xf32>
    %127 = arith.addf %117, %126 : vector<4x16x16xf32>
    %c0_44 = arith.constant 0 : index
    %c0_45 = arith.constant 0 : index
    %c0_46 = arith.constant 0 : index
    %c0_47 = arith.constant 0 : index
    %128 = vector.load %arg3[%c0_44, %c0_45, %c0_46, %c0_47] : memref<1x4x16x16xf32, #tpu.memory_space<vmem>>, vector<1x4x16x16xf32>
    %129 = vector.shape_cast %128 : vector<1x4x16x16xf32> to vector<4x16x16xf32>
    %130 = vector.shape_cast %127 : vector<4x16x16xf32> to vector<1x4x16x16xf32>
    tpu.vector_store %arg3[%c0_44, %c0_45, %c0_46, %c0_47], %130 {strides = array<i32>} : memref<1x4x16x16xf32, #tpu.memory_space<vmem>>, vector<1x4x16x16xf32>,
    %c0_48 = arith.constant 0 : index
    %c0_49 = arith.constant 0 : index
    %c0_50 = arith.constant 0 : index
    %c0_51 = arith.constant 0 : index
    %131 = vector.load %arg4[%c0_48, %c0_49, %c0_50, %c0_51] : memref<1x1x16x16xf32, #tpu.memory_space<vmem>>, vector<1x1x16x16xf32>
    %132 = vector.shape_cast %131 : vector<1x1x16x16xf32> to vector<16x16xf32>
    %133 = vector.shape_cast %122 : vector<16x16xf32> to vector<1x1x16x16xf32>
    tpu.vector_store %arg4[%c0_48, %c0_49, %c0_50, %c0_51], %133 {strides = array<i32>} : memref<1x1x16x16xf32, #tpu.memory_space<vmem>>, vector<1x1x16x16xf32>,
    return
  }
  func.func @transform_0(%arg0: i32) -> (i32, i32, i32, i32) {
    %c0_i32 = arith.constant 0 : i32
    %c0_i32_0 = arith.constant 0 : i32
    %c0_i32_1 = arith.constant 0 : i32
    %c0_i32_2 = arith.constant 0 : i32
    return %arg0, %c0_i32, %c0_i32_0, %c0_i32_1 : i32, i32, i32, i32
  }
  func.func @transform_1(%arg0: i32) -> (i32, i32, i32, i32) {
    %c0_i32 = arith.constant 0 : i32
    %c0_i32_0 = arith.constant 0 : i32
    %c0_i32_1 = arith.constant 0 : i32
    %c0_i32_2 = arith.constant 0 : i32
    return %arg0, %c0_i32, %c0_i32_0, %c0_i32_1 : i32, i32, i32, i32
  }
  func.func @transform_2(%arg0: i32) -> (i32, i32, i32, i32) {
    %c0_i32 = arith.constant 0 : i32
    %c0_i32_0 = arith.constant 0 : i32
    %c0_i32_1 = arith.constant 0 : i32
    %c0_i32_2 = arith.constant 0 : i32
    return %arg0, %c0_i32, %c0_i32_0, %c0_i32_1 : i32, i32, i32, i32
  }
  func.func @transform_3(%arg0: i32) -> (i32, i32, i32, i32) {
    %c0_i32 = arith.constant 0 : i32
    %c0_i32_0 = arith.constant 0 : i32
    %c0_i32_1 = arith.constant 0 : i32
    %c0_i32_2 = arith.constant 0 : i32
    return %arg0, %c0_i32, %c0_i32_0, %c0_i32_1 : i32, i32, i32, i32
  }
  func.func @transform_4(%arg0: i32) -> (i32, i32, i32, i32) {
    %c0_i32 = arith.constant 0 : i32
    %c0_i32_0 = arith.constant 0 : i32
    %c0_i32_1 = arith.constant 0 : i32
    %c0_i32_2 = arith.constant 0 : i32
    return %arg0, %c0_i32, %c0_i32_0, %c0_i32_1 : i32, i32, i32, i32
  }
}

</mosaic_0001>

<llo_original>
// kernel: tpu_custom_call.1
$region0: #{tpu_custom_call.1}
  #allocation0 [shape = 'u32[]', space=smem, size = 0x4, offset = 0x4, fixed_abs, tag = 'smem constant byte address 0x4 - core index']
  #allocation1 [shape = 'u32[144,128]{1,0:T(1,128)}', space=vmem, size = 0x12000, scoped, tag = 'internal scratch']
  #allocation2 [shape = 'f32[4,18,18]{2,1,0:T(8,128)}', space=vmem, size = 0xc000, scoped, tag = 'scratch operand']
  %s0 = inlined_call_operand.hbm [shape: f32[2,4,16,16], index: 0, kind: input, shape index: {}]
  %s1 = inlined_call_operand.hbm [shape: f32[2,9,16,16], index: 1, kind: input, shape index: {}]
  %s2 = inlined_call_operand.hbm [shape: f32[2,4,16,16], index: 2, kind: output, shape index: {0}]
  %s3 = inlined_call_operand.hbm [shape: f32[2,1,16,16], index: 3, kind: output, shape index: {1}]
  %s4 = inlined_call_operand.hbm [shape: f32[2,1,16,16], index: 4, kind: output, shape index: {2}]
  %5 = xla_tuple %s2, %s3, %s4
  %s6 = sld [smem:[#allocation0]]
  $region65: #{tpu_custom_call.1} parent=0
    _
  %s8 = ssub.s32 1, %s6
  %s9 = scalar_select 0, %s8, %s6
  $region1: #{tpu_custom_call.1} parent=0
    #allocation3 [shape = 'u8[65536]{0}', space=vmem, size = 0x10000, scoped, tag = 'input window, operand 0']
    #allocation4 [shape = 's32[2]{0}', space=sflag, size = 0x8, scoped, tag = 'scoped memory for tpu_custom_call.1']
    #allocation5 [shape = 's32[2]{0}', space=sflag, size = 0x8, scoped, tag = 'scoped memory for tpu_custom_call.1']
    #allocation6 [shape = 'u8[147456]{0}', space=vmem, size = 0x24000, scoped, tag = 'input window, operand 1']
    #allocation7 [shape = 's32[2]{0}', space=sflag, size = 0x8, scoped, tag = 'scoped memory for tpu_custom_call.1']
    #allocation8 [shape = 'u8[65536]{0}', space=vmem, size = 0x10000, scoped, tag = 'output window, operand 0']
    #allocation9 [shape = 'u8[16384]{0}', space=vmem, size = 0x4000, scoped, tag = 'output window, operand 1']
    #allocation10 [shape = 's32[2]{0}', space=sflag, size = 0x8, scoped, tag = 'scoped memory for tpu_custom_call.1']
    #allocation11 [shape = 'u8[16384]{0}', space=vmem, size = 0x4000, scoped, tag = 'output window, operand 2']
    %10 = vsyncpa [#allocation4], 0
    %s11 = scalar_lea.sflag [#allocation4], 1
    %12 = vsyncpa %s11, 0
    %13 = vsyncpa [#allocation7], 0
    %s14 = scalar_lea.sflag [#allocation7], 1
    %15 = vsyncpa %s14, 0
    %16 = vsyncpa [#allocation5], 0
    %s17 = scalar_lea.sflag [#allocation5], 1
    %18 = vsyncpa %s17, 0
    %19 = vsyncpa [#allocation10], 0
    %s20 = scalar_lea.sflag [#allocation10], 1
    %21 = vsyncpa %s20, 0
    loop: start=0, step=1, limit=4
    $region2: #{tpu_custom_call.1} parent=1 // loop_pre_header
      _
    $region3: #{tpu_custom_call.1} parent=1 // loop_header
      %s23 = sphi 0, %s27
      %p24 = scmp.ge.s32.totalorder %s23, 4
      %s33 = sphi 0, %s35
      %s36 = sphi 0, %s33
      %s37 = sphi 0, %s36
      %s53 = sphi 0, %s37
      %s59 = sphi 0, %s61
      %s62 = sphi 0, %s59
      %s63 = sphi 0, %s62
      %s79 = sphi 0, %s63
      %s85 = sphi 0, %s87
      %s88 = sphi 0, %s85
      %s89 = sphi 0, %s88
      %s105 = sphi 0, %s89
      %s111 = sphi 0, %s113
      %s114 = sphi 0, %s111
      %s115 = sphi 0, %s114
      %s131 = sphi 0, %s115
      %s137 = sphi 0, %s139
      %s140 = sphi 0, %s137
      %s141 = sphi 0, %s140
      %s157 = sphi 0, %s141
    $region4: #{tpu_custom_call.1} parent=1 // loop_header_branch
      %26 = sbr.rel (%p24) target = $region8
    $region5: #{tpu_custom_call.1} parent=1 // loop_body
      %s28 = ssub.s32 %s23, 1
      %s29 = ssub.s32 %s23, 2
      %s30 = sadd.s32 %s23, 1
      %s31 = ssub.s32 %s23, %s30
      %p32 = scmp.eq.s32.totalorder %s31, 0
      %s34 = sadd.s32 %s33, 1
      %s35 = scalar_select %p32, %s33, %s34
      %p38 = pneg %p32
      %p39 = scmp.eq.s32.totalorder %s23, 1
      %p40 = por %p38, %p39
      %p41 = scmp.ne.s32.totalorder %s33, %s36
      %p42 = scmp.eq.s32.totalorder %s23, 0
      %p43 = por %p41, %p42
      %p44 = scmp.ne.s32.totalorder %s33, %s36
      %p45 = scmp.eq.s32.totalorder %s28, 1
      %p46 = por %p44, %p45
      %p47 = scmp.ne.s32.totalorder %s36, %s37
      %p48 = scmp.eq.s32.totalorder %s28, 0
      %p49 = por %p47, %p48
      %p50 = scmp.ne.s32.totalorder %s36, %s37
      %p51 = scmp.eq.s32.totalorder %s29, 1
      %p52 = por %p50, %p51
      %p54 = scmp.ne.s32.totalorder %s37, %s53
      %p55 = scmp.eq.s32.totalorder %s29, 0
      %p56 = por %p54, %p55
      %s57 = ssub.s32 %s23, %s30
      %p58 = scmp.eq.s32.totalorder %s57, 0
      %s60 = sadd.s32 %s59, 1
      %s61 = scalar_select %p58, %s59, %s60
      %p64 = pneg %p58
      %p65 = scmp.eq.s32.totalorder %s23, 1
      %p66 = por %p64, %p65
      %p67 = scmp.ne.s32.totalorder %s59, %s62
      %p68 = scmp.eq.s32.totalorder %s23, 0
      %p69 = por %p67, %p68
      %p70 = scmp.ne.s32.totalorder %s59, %s62
      %p71 = scmp.eq.s32.totalorder %s28, 1
      %p72 = por %p70, %p71
      %p73 = scmp.ne.s32.totalorder %s62, %s63
      %p74 = scmp.eq.s32.totalorder %s28, 0
      %p75 = por %p73, %p74
      %p76 = scmp.ne.s32.totalorder %s62, %s63
      %p77 = scmp.eq.s32.totalorder %s29, 1
      %p78 = por %p76, %p77
      %p80 = scmp.ne.s32.totalorder %s63, %s79
      %p81 = scmp.eq.s32.totalorder %s29, 0
      %p82 = por %p80, %p81
      %s83 = ssub.s32 %s23, %s30
      %p84 = scmp.eq.s32.totalorder %s83, 0
      %s86 = sadd.s32 %s85, 1
      %s87 = scalar_select %p84, %s85, %s86
      %p90 = pneg %p84
      %p91 = scmp.eq.s32.totalorder %s23, 1
      %p92 = por %p90, %p91
      %p93 = scmp.ne.s32.totalorder %s85, %s88
      %p94 = scmp.eq.s32.totalorder %s23, 0
      %p95 = por %p93, %p94
      %p96 = scmp.ne.s32.totalorder %s85, %s88
      %p97 = scmp.eq.s32.totalorder %s28, 1
      %p98 = por %p96, %p97
      %p99 = scmp.ne.s32.totalorder %s88, %s89
      %p100 = scmp.eq.s32.totalorder %s28, 0
      %p101 = por %p99, %p100
      %p102 = scmp.ne.s32.totalorder %s88, %s89
      %p103 = scmp.eq.s32.totalorder %s29, 1
      %p104 = por %p102, %p103
      %p106 = scmp.ne.s32.totalorder %s89, %s105
      %p107 = scmp.eq.s32.totalorder %s29, 0
      %p108 = por %p106, %p107
      %s109 = ssub.s32 %s23, %s30
      %p110 = scmp.eq.s32.totalorder %s109, 0
      %s112 = sadd.s32 %s111, 1
      %s113 = scalar_select %p110, %s111, %s112
      %p116 = pneg %p110
      %p117 = scmp.eq.s32.totalorder %s23, 1
      %p118 = por %p116, %p117
      %p119 = scmp.ne.s32.totalorder %s111, %s114
      %p120 = scmp.eq.s32.totalorder %s23, 0
      %p121 = por %p119, %p120
      %p122 = scmp.ne.s32.totalorder %s111, %s114
      %p123 = scmp.eq.s32.totalorder %s28, 1
      %p124 = por %p122, %p123
      %p125 = scmp.ne.s32.totalorder %s114, %s115
      %p126 = scmp.eq.s32.totalorder %s28, 0
      %p127 = por %p125, %p126
      %p128 = scmp.ne.s32.totalorder %s114, %s115
      %p129 = scmp.eq.s32.totalorder %s29, 1
      %p130 = por %p128, %p129
      %p132 = scmp.ne.s32.totalorder %s115, %s131
      %p133 = scmp.eq.s32.totalorder %s29, 0
      %p134 = por %p132, %p133
      %s135 = ssub.s32 %s23, %s30
      %p136 = scmp.eq.s32.totalorder %s135, 0
      %s138 = sadd.s32 %s137, 1
      %s139 = scalar_select %p136, %s137, %s138
      %p142 = pneg %p136
      %p143 = scmp.eq.s32.totalorder %s23, 1
      %p144 = por %p142, %p143
      %p145 = scmp.ne.s32.totalorder %s137, %s140
      %p146 = scmp.eq.s32.totalorder %s23, 0
      %p147 = por %p145, %p146
      %p148 = scmp.ne.s32.totalorder %s137, %s140
      %p149 = scmp.eq.s32.totalorder %s28, 1
      %p150 = por %p148, %p149
      %p151 = scmp.ne.s32.totalorder %s140, %s141
      %p152 = scmp.eq.s32.totalorder %s28, 0
      %p153 = por %p151, %p152
      %p154 = scmp.ne.s32.totalorder %s140, %s141
      %p155 = scmp.eq.s32.totalorder %s29, 1
      %p156 = por %p154, %p155
      %p158 = scmp.ne.s32.totalorder %s141, %s157
      %p159 = scmp.eq.s32.totalorder %s29, 0
      %p160 = por %p158, %p159
      %p161 = scmp.le.s32.totalorder 1, %s23
      %p162 = scmp.lt.s32.totalorder %s23, 3
      %p163 = pnand %p161, %p162
      %p164 = pneg %p163
      // Predicated region
      $region9: #{tpu_custom_call.1} parent=5 // pred_check
        _
      $region10: #{tpu_custom_call.1} parent=5 // pred_check_branch
        %166 = sbr.rel (%p163) target = $region12
      $region11: #{tpu_custom_call.1} parent=5 // pred_region
        %s167 = ssub.s32 %s23, 1
      $region12: #{tpu_custom_call.1} parent=5 // pred_fallthru
        _
      %p168 = scmp.lt.s32.totalorder %s23, 2
      // Predicated region
      $region13: #{tpu_custom_call.1} parent=5 // pred_check
        %p169 = pneg %p168
      $region14: #{tpu_custom_call.1} parent=5 // pred_check_branch
        %171 = sbr.rel (%p169) target = $region16
      $region15: #{tpu_custom_call.1} parent=5 // pred_region
        // Predicated region
        $region17: #{tpu_custom_call.1} parent=15 // pred_check
          %p172 = pneg %p43
        $region18: #{tpu_custom_call.1} parent=15 // pred_check_branch
          %174 = sbr.rel (%p172) target = $region20
        $region19: #{tpu_custom_call.1} parent=15 // pred_region
          %s175 = sand.u32 %s33, 1
          %s176 = scalar_lea.sflag [#allocation4], %s175
          %s177 = sand.u32 %s33, 1
          %s178 = smul.addr %s177, 64
          %s179 = scalar_lea.vmem [#allocation3], %s178
          %s181 = ssub.s32 1024, 1024
          %182 = vsyncadd %s176, %s181
          %s183 = smul.addr %s23, 8
          %s184 = smul.addr %s183, 128
          %s185 = scalar_lea.hbm %s0, %s184
          %s186 = sshll.u32 %s179, 4
          %s187 = int_to_ptr.vmem [resolvable:$true] %s186
          %192 = dma.hbm_to_vmem [thread:$0]  %s185, 1024, %s187, %s176, 128, 128, 8
        $region20: #{tpu_custom_call.1} parent=15 // pred_fallthru
          _
        // Predicated region
        $region21: #{tpu_custom_call.1} parent=15 // pred_check
          %p193 = pneg %p69
        $region22: #{tpu_custom_call.1} parent=15 // pred_check_branch
          %195 = sbr.rel (%p193) target = $region24
        $region23: #{tpu_custom_call.1} parent=15 // pred_region
          %s196 = sand.u32 %s59, 1
          %s197 = scalar_lea.sflag [#allocation7], %s196
          %s198 = sand.u32 %s59, 1
          %s199 = smul.addr %s198, 144
          %s200 = scalar_lea.vmem [#allocation6], %s199
          %s202 = ssub.s32 2304, 2304
          %203 = vsyncadd %s197, %s202
          %s204 = smul.addr %s23, 18
          %s205 = smul.addr %s204, 128
          %s206 = scalar_lea.hbm %s1, %s205
          %s207 = sshll.u32 %s200, 4
          %s208 = int_to_ptr.vmem [resolvable:$true] %s207
          %213 = dma.hbm_to_vmem [thread:$0]  %s206, 2304, %s208, %s197, 128, 128, 8
        $region24: #{tpu_custom_call.1} parent=15 // pred_fallthru
          _
      $region16: #{tpu_custom_call.1} parent=5 // pred_fallthru
        _
      %p214 = scmp.le.s32.totalorder 1, %s23
      %p215 = scmp.lt.s32.totalorder %s23, 3
      %p216 = pnand %p214, %p215
      %p217 = pneg %p216
      // Predicated region
      $region25: #{tpu_custom_call.1} parent=5 // pred_check
        _
      $region26: #{tpu_custom_call.1} parent=5 // pred_check_branch
        %219 = sbr.rel (%p216) target = $region28
      $region27: #{tpu_custom_call.1} parent=5 // pred_region
        %s220 = ssub.s32 %s23, 1
        %s221 = sand.u32 %s36, 1
        %s222 = scalar_lea.sflag [#allocation4], %s221
        %s223 = sand.u32 %s36, 1
        %s224 = smul.addr %s223, 64
        %s225 = scalar_lea.vmem [#allocation3], %s224
        // Predicated region
        $region29: #{tpu_custom_call.1} parent=27 // pred_check
          %p226 = pneg %p49
        $region30: #{tpu_custom_call.1} parent=27 // pred_check_branch
          %228 = sbr.rel (%p226) target = $region32
        $region31: #{tpu_custom_call.1} parent=27 // pred_region
          %229 = dma.done %s222, 1024
        $region32: #{tpu_custom_call.1} parent=27 // pred_fallthru
          _
        %s230 = sand.u32 %s62, 1
        %s231 = scalar_lea.sflag [#allocation7], %s230
        %s232 = sand.u32 %s62, 1
        %s233 = smul.addr %s232, 144
        %s234 = scalar_lea.vmem [#allocation6], %s233
        // Predicated region
        $region33: #{tpu_custom_call.1} parent=27 // pred_check
          %p235 = pneg %p75
        $region34: #{tpu_custom_call.1} parent=27 // pred_check_branch
          %237 = sbr.rel (%p235) target = $region36
        $region35: #{tpu_custom_call.1} parent=27 // pred_region
          %238 = dma.done %s231, 2304
        $region36: #{tpu_custom_call.1} parent=27 // pred_fallthru
          _
        %s239 = sand.u32 %s36, 1
        %s240 = scalar_lea.sflag [#allocation4], %s239
        %s241 = sand.u32 %s36, 1
        %s242 = smul.addr %s241, 64
        %s243 = scalar_lea.vmem [#allocation3], %s242
        %p244 = pneg %p49
        %p245 = pneg %p46
        %s246 = sand.u32 %s62, 1
        %s247 = scalar_lea.sflag [#allocation7], %s246
        %s248 = sand.u32 %s62, 1
        %s249 = smul.addr %s248, 144
        %s250 = scalar_lea.vmem [#allocation6], %s249
        %p251 = pneg %p75
        %p252 = pneg %p72
        %p253 = pneg %p101
        %p254 = pneg %p98
        %s255 = sand.u32 %s88, 1
        %s256 = scalar_lea.sflag [#allocation5], %s255
        %s257 = sand.u32 %s88, 1
        %s258 = smul.addr %s257, 64
        %s259 = scalar_lea.vmem [#allocation8], %s258
        %p260 = pneg %p127
        %p261 = pneg %p124
        %s262 = sand.u32 %s28, 1
        %s263 = scalar_lea.sflag [#allocation10], %s262
        %s264 = sand.u32 %s114, 1
        %s265 = smul.addr %s264, 16
        %s266 = scalar_lea.vmem [#allocation9], %s265
        %p267 = pneg %p153
        %p268 = pneg %p150
        %s269 = sand.u32 %s28, 1
        %s270 = scalar_lea.sflag [#allocation10], %s269
        %s271 = sand.u32 %s140, 1
        %s272 = smul.addr %s271, 16
        %s273 = scalar_lea.vmem [#allocation11], %s272
        %v274 = vld [vmem:[%s225] sm:$0xff]
        %v275 = vld [vmem:[%s225 + $0x8] sm:$0xff]
        %v276 = vld [vmem:[%s225 + $0x10] sm:$0xff]
        %v277 = vld [vmem:[%s225 + $0x18] sm:$0xff]
        %v278 = vld [vmem:[%s225 + $0x20] sm:$0xff]
        %v279 = vld [vmem:[%s225 + $0x28] sm:$0xff]
        %v280 = vld [vmem:[%s225 + $0x30] sm:$0xff]
        %v281 = vld [vmem:[%s225 + $0x38] sm:$0xff]
        %v282 = vld [vmem:[%s234] sm:$0xff]
        %v283 = vld [vmem:[%s234 + $0x8] sm:$0xff]
        %v284 = vld [vmem:[%s234 + $0x10] sm:$0xff]
        %v285 = vld [vmem:[%s234 + $0x18] sm:$0xff]
        %v286 = vld [vmem:[%s234 + $0x20] sm:$0xff]
        %v287 = vld [vmem:[%s234 + $0x28] sm:$0xff]
        %v288 = vld [vmem:[%s234 + $0x30] sm:$0xff]
        %v289 = vld [vmem:[%s234 + $0x38] sm:$0xff]
        %v290 = vld [vmem:[%s234 + $0x40] sm:$0xff]
        %v291 = vld [vmem:[%s234 + $0x48] sm:$0xff]
        %v292 = vld [vmem:[%s234 + $0x50] sm:$0xff]
        %v293 = vld [vmem:[%s234 + $0x58] sm:$0xff]
        %v294 = vld [vmem:[%s234 + $0x60] sm:$0xff]
        %v295 = vld [vmem:[%s234 + $0x68] sm:$0xff]
        %v296 = vld [vmem:[%s234 + $0x70] sm:$0xff]
        %v297 = vld [vmem:[%s234 + $0x78] sm:$0xff]
        %v298 = vld [vmem:[%s234 + $0x80] sm:$0xff]
        %v299 = vld [vmem:[%s234 + $0x88] sm:$0xff]
        %v300 = vmax.f32 %v282, %v284
        %v301 = vmax.f32 %v283, %v285
        %v302 = vmax.f32 %v300, %v286
        %v303 = vmax.f32 %v301, %v287
        %v304 = vmax.f32 %v302, %v288
        %v305 = vmax.f32 %v303, %v289
        %v306 = vmax.f32 %v304, %v290
        %v307 = vmax.f32 %v305, %v291
        %v308 = vmax.f32 %v306, %v292
        %v309 = vmax.f32 %v307, %v293
        %v310 = vmax.f32 %v308, %v294
        %v311 = vmax.f32 %v309, %v295
        %v312 = vmax.f32 %v310, %v296
        %v313 = vmax.f32 %v311, %v297
        %v314 = vmax.f32 %v312, %v298
        %v315 = vmax.f32 %v313, %v299
        %vm316 = vcmask 130048
        %317 = vst.msk [vmem:[%s273] sm:$0xff] %vm316, %v314
        %318 = vst.msk [vmem:[%s273 + $0x8] sm:$0xff] %vm316, %v315
        %vm319 = vcmask 146432
        %320 = vst.msk [vmem:[#allocation2] sm:$0xff] %vm319, 0.0
        %321 = vst.msk [vmem:[#allocation2 + $0x8] sm:$0xff] %vm319, 0.0
        %vm322 = vcmask 140288
        %323 = vst.msk [vmem:[#allocation2 + $0x10] sm:$0x3] %vm322, 0.0
        %324 = vst.msk [vmem:[#allocation2 + $0x18] sm:$0xff] %vm319, 0.0
        %325 = vst.msk [vmem:[#allocation2 + $0x20] sm:$0xff] %vm319, 0.0
        %326 = vst.msk [vmem:[#allocation2 + $0x28] sm:$0x3] %vm322, 0.0
        %327 = vst.msk [vmem:[#allocation2 + $0x30] sm:$0xff] %vm319, 0.0
        %328 = vst.msk [vmem:[#allocation2 + $0x38] sm:$0xff] %vm319, 0.0
        %329 = vst.msk [vmem:[#allocation2 + $0x40] sm:$0x3] %vm322, 0.0
        %330 = vst.msk [vmem:[#allocation2 + $0x48] sm:$0xff] %vm319, 0.0
        %331 = vst.msk [vmem:[#allocation2 + $0x50] sm:$0xff] %vm319, 0.0
        %332 = vst.msk [vmem:[#allocation2 + $0x58] sm:$0x3] %vm322, 0.0
        %341 = vrot.lane.b32.xlu0 %v274, 1
        %v342 = vpop.permute.xlu0 %341
        %343 = vrot.lane.b32.xlu0 %v275, 1
        %v344 = vpop.permute.xlu0 %343
        %345 = vrot.lane.b32.xlu0 %v276, 1
        %v346 = vpop.permute.xlu0 %345
        %347 = vrot.lane.b32.xlu0 %v277, 1
        %v348 = vpop.permute.xlu0 %347
        %349 = vrot.lane.b32.xlu0 %v278, 1
        %v350 = vpop.permute.xlu0 %349
        %351 = vrot.lane.b32.xlu0 %v279, 1
        %v352 = vpop.permute.xlu0 %351
        %353 = vrot.lane.b32.xlu0 %v280, 1
        %v354 = vpop.permute.xlu0 %353
        %355 = vrot.lane.b32.xlu0 %v281, 1
        %v356 = vpop.permute.xlu0 %355
        %vm365 = vcmask 138248
        %366 = vst.msk [vmem:[#allocation2 + $0x1] sm:$0xff] %vm365, %v342
        %367 = vst.msk [vmem:[#allocation2 + $0x9] sm:$0xff] %vm365, %v344
        %368 = vst.msk [vmem:[#allocation2 + $0x19] sm:$0xff] %vm365, %v346
        %369 = vst.msk [vmem:[#allocation2 + $0x21] sm:$0xff] %vm365, %v348
        %370 = vst.msk [vmem:[#allocation2 + $0x31] sm:$0xff] %vm365, %v350
        %371 = vst.msk [vmem:[#allocation2 + $0x39] sm:$0xff] %vm365, %v352
        %372 = vst.msk [vmem:[#allocation2 + $0x49] sm:$0xff] %vm365, %v354
        %373 = vst.msk [vmem:[#allocation2 + $0x51] sm:$0xff] %vm365, %v356
        %v374 = vsub.f32 %v282, %v314
        %v375 = vsub.f32 %v283, %v315
        %v376 = vmul.f32 %v374, 1.442695
        %v377 = vpow.pop %v376
        %v378 = vmul.f32 %v375, 1.442695
        %v379 = vpow.pop %v378
        %v380 = vadd.f32 %v377, 0.0
        %v381 = vadd.f32 %v379, 0.0
        %v382 = vld [vmem:[#allocation2] sm:$0xff]
        %v383 = vld [vmem:[#allocation2 + $0x8] sm:$0xff]
        %v384 = vld [vmem:[#allocation2 + $0x18] sm:$0xff]
        %v385 = vld [vmem:[#allocation2 + $0x20] sm:$0xff]
        %v386 = vld [vmem:[#allocation2 + $0x30] sm:$0xff]
        %v387 = vld [vmem:[#allocation2 + $0x38] sm:$0xff]
        %v388 = vld [vmem:[#allocation2 + $0x48] sm:$0xff]
        %v389 = vld [vmem:[#allocation2 + $0x50] sm:$0xff]
        %v390 = vmul.f32 %v382, %v377
        %v391 = vmul.f32 %v383, %v379
        %v392 = vmul.f32 %v384, %v377
        %v393 = vmul.f32 %v385, %v379
        %v394 = vmul.f32 %v386, %v377
        %v395 = vmul.f32 %v387, %v379
        %v396 = vmul.f32 %v388, %v377
        %v397 = vmul.f32 %v389, %v379
        %v398 = vadd.f32 %v390, 0.0
        %v399 = vadd.f32 %v391, 0.0
        %v400 = vadd.f32 %v392, 0.0
        %v401 = vadd.f32 %v393, 0.0
        %v402 = vadd.f32 %v394, 0.0
        %v403 = vadd.f32 %v395, 0.0
        %v404 = vadd.f32 %v396, 0.0
        %v405 = vadd.f32 %v397, 0.0
        %v406 = vsub.f32 %v284, %v314
        %v407 = vsub.f32 %v285, %v315
        %v408 = vmul.f32 %v406, 1.442695
        %v409 = vpow.pop %v408
        %v410 = vmul.f32 %v407, 1.442695
        %v411 = vpow.pop %v410
        %v412 = vadd.f32 %v380, %v409
        %v413 = vadd.f32 %v381, %v411
        %416 = vrot.lane.b32.xlu0 %v409, 1
        %v417 = vpop.permute.xlu0 %416
        %418 = vrot.lane.b32.xlu0 %v411, 1
        %v419 = vpop.permute.xlu0 %418
        %v422 = vmul.f32 %v382, %v417
        %v423 = vmul.f32 %v383, %v419
        %v424 = vmul.f32 %v384, %v417
        %v425 = vmul.f32 %v385, %v419
        %v426 = vmul.f32 %v386, %v417
        %v427 = vmul.f32 %v387, %v419
        %v428 = vmul.f32 %v388, %v417
        %v429 = vmul.f32 %v389, %v419
        %438 = vrot.lane.b32.xlu0 %v422, 127
        %v439 = vpop.permute.xlu0 %438
        %440 = vrot.lane.b32.xlu0 %v423, 127
        %v441 = vpop.permute.xlu0 %440
        %442 = vrot.lane.b32.xlu0 %v424, 127
        %v443 = vpop.permute.xlu0 %442
        %444 = vrot.lane.b32.xlu0 %v425, 127
        %v445 = vpop.permute.xlu0 %444
        %446 = vrot.lane.b32.xlu0 %v426, 127
        %v447 = vpop.permute.xlu0 %446
        %448 = vrot.lane.b32.xlu0 %v427, 127
        %v449 = vpop.permute.xlu0 %448
        %450 = vrot.lane.b32.xlu0 %v428, 127
        %v451 = vpop.permute.xlu0 %450
        %452 = vrot.lane.b32.xlu0 %v429, 127
        %v453 = vpop.permute.xlu0 %452
        %v462 = vadd.f32 %v398, %v439
        %v463 = vadd.f32 %v399, %v441
        %v464 = vadd.f32 %v400, %v443
        %v465 = vadd.f32 %v401, %v445
        %v466 = vadd.f32 %v402, %v447
        %v467 = vadd.f32 %v403, %v449
        %v468 = vadd.f32 %v404, %v451
        %v469 = vadd.f32 %v405, %v453
        %v470 = vsub.f32 %v286, %v314
        %v471 = vsub.f32 %v287, %v315
        %v472 = vmul.f32 %v470, 1.442695
        %v473 = vpow.pop %v472
        %v474 = vmul.f32 %v471, 1.442695
        %v475 = vpow.pop %v474
        %v476 = vadd.f32 %v412, %v473
        %v477 = vadd.f32 %v413, %v475
        %480 = vrot.lane.b32.xlu0 %v473, 2
        %v481 = vpop.permute.xlu0 %480
        %482 = vrot.lane.b32.xlu0 %v475, 2
        %v483 = vpop.permute.xlu0 %482
        %v486 = vmul.f32 %v382, %v481
        %v487 = vmul.f32 %v383, %v483
        %v488 = vmul.f32 %v384, %v481
        %v489 = vmul.f32 %v385, %v483
        %v490 = vmul.f32 %v386, %v481
        %v491 = vmul.f32 %v387, %v483
        %v492 = vmul.f32 %v388, %v481
        %v493 = vmul.f32 %v389, %v483
        %502 = vrot.lane.b32.xlu0 %v486, 126
        %v503 = vpop.permute.xlu0 %502
        %504 = vrot.lane.b32.xlu0 %v487, 126
        %v505 = vpop.permute.xlu0 %504
        %506 = vrot.lane.b32.xlu0 %v488, 126
        %v507 = vpop.permute.xlu0 %506
        %508 = vrot.lane.b32.xlu0 %v489, 126
        %v509 = vpop.permute.xlu0 %508
        %510 = vrot.lane.b32.xlu0 %v490, 126
        %v511 = vpop.permute.xlu0 %510
        %512 = vrot.lane.b32.xlu0 %v491, 126
        %v513 = vpop.permute.xlu0 %512
        %514 = vrot.lane.b32.xlu0 %v492, 126
        %v515 = vpop.permute.xlu0 %514
        %516 = vrot.lane.b32.xlu0 %v493, 126
        %v517 = vpop.permute.xlu0 %516
        %v526 = vadd.f32 %v462, %v503
        %v527 = vadd.f32 %v463, %v505
        %v528 = vadd.f32 %v464, %v507
        %v529 = vadd.f32 %v465, %v509
        %v530 = vadd.f32 %v466, %v511
        %v531 = vadd.f32 %v467, %v513
        %v532 = vadd.f32 %v468, %v515
        %v533 = vadd.f32 %v469, %v517
        %v534 = vsub.f32 %v288, %v314
        %v535 = vsub.f32 %v289, %v315
        %v536 = vmul.f32 %v534, 1.442695
        %v537 = vpow.pop %v536
        %v538 = vmul.f32 %v535, 1.442695
        %v539 = vpow.pop %v538
        %v540 = vadd.f32 %v476, %v537
        %v541 = vadd.f32 %v477, %v539
        %v542 = vld [vmem:[#allocation2 + $0x1] sm:$0xff]
        %v543 = vld [vmem:[#allocation2 + $0x9] sm:$0xff]
        %v544 = vld [vmem:[#allocation2 + $0x19] sm:$0xff]
        %v545 = vld [vmem:[#allocation2 + $0x21] sm:$0xff]
        %v546 = vld [vmem:[#allocation2 + $0x31] sm:$0xff]
        %v547 = vld [vmem:[#allocation2 + $0x39] sm:$0xff]
        %v548 = vld [vmem:[#allocation2 + $0x49] sm:$0xff]
        %v549 = vld [vmem:[#allocation2 + $0x51] sm:$0xff]
        %v550 = vmul.f32 %v542, %v537
        %v551 = vmul.f32 %v543, %v539
        %v552 = vmul.f32 %v544, %v537
        %v553 = vmul.f32 %v545, %v539
        %v554 = vmul.f32 %v546, %v537
        %v555 = vmul.f32 %v547, %v539
        %v556 = vmul.f32 %v548, %v537
        %v557 = vmul.f32 %v549, %v539
        %v558 = vadd.f32 %v526, %v550
        %v559 = vadd.f32 %v527, %v551
        %v560 = vadd.f32 %v528, %v552
        %v561 = vadd.f32 %v529, %v553
        %v562 = vadd.f32 %v530, %v554
        %v563 = vadd.f32 %v531, %v555
        %v564 = vadd.f32 %v532, %v556
        %v565 = vadd.f32 %v533, %v557
        %v566 = vsub.f32 %v290, %v314
        %v567 = vsub.f32 %v291, %v315
        %v568 = vmul.f32 %v566, 1.442695
        %v569 = vpow.pop %v568
        %v570 = vmul.f32 %v567, 1.442695
        %v571 = vpow.pop %v570
        %v572 = vadd.f32 %v540, %v569
        %v573 = vadd.f32 %v541, %v571
        %576 = vrot.lane.b32.xlu0 %v569, 1
        %v577 = vpop.permute.xlu0 %576
        %578 = vrot.lane.b32.xlu0 %v571, 1
        %v579 = vpop.permute.xlu0 %578
        %v582 = vmul.f32 %v542, %v577
        %v583 = vmul.f32 %v543, %v579
        %v584 = vmul.f32 %v544, %v577
        %v585 = vmul.f32 %v545, %v579
        %v586 = vmul.f32 %v546, %v577
        %v587 = vmul.f32 %v547, %v579
        %v588 = vmul.f32 %v548, %v577
        %v589 = vmul.f32 %v549, %v579
        %598 = vrot.lane.b32.xlu0 %v582, 127
        %v599 = vpop.permute.xlu0 %598
        %600 = vrot.lane.b32.xlu0 %v583, 127
        %v601 = vpop.permute.xlu0 %600
        %602 = vrot.lane.b32.xlu0 %v584, 127
        %v603 = vpop.permute.xlu0 %602
        %604 = vrot.lane.b32.xlu0 %v585, 127
        %v605 = vpop.permute.xlu0 %604
        %606 = vrot.lane.b32.xlu0 %v586, 127
        %v607 = vpop.permute.xlu0 %606
        %608 = vrot.lane.b32.xlu0 %v587, 127
        %v609 = vpop.permute.xlu0 %608
        %610 = vrot.lane.b32.xlu0 %v588, 127
        %v611 = vpop.permute.xlu0 %610
        %612 = vrot.lane.b32.xlu0 %v589, 127
        %v613 = vpop.permute.xlu0 %612
        %v622 = vadd.f32 %v558, %v599
        %v623 = vadd.f32 %v559, %v601
        %v624 = vadd.f32 %v560, %v603
        %v625 = vadd.f32 %v561, %v605
        %v626 = vadd.f32 %v562, %v607
        %v627 = vadd.f32 %v563, %v609
        %v628 = vadd.f32 %v564, %v611
        %v629 = vadd.f32 %v565, %v613
        %v630 = vsub.f32 %v292, %v314
        %v631 = vsub.f32 %v293, %v315
        %v632 = vmul.f32 %v630, 1.442695
        %v633 = vpow.pop %v632
        %v634 = vmul.f32 %v631, 1.442695
        %v635 = vpow.pop %v634
        %v636 = vadd.f32 %v572, %v633
        %v637 = vadd.f32 %v573, %v635
        %640 = vrot.lane.b32.xlu0 %v633, 2
        %v641 = vpop.permute.xlu0 %640
        %642 = vrot.lane.b32.xlu0 %v635, 2
        %v643 = vpop.permute.xlu0 %642
        %v646 = vmul.f32 %v542, %v641
        %v647 = vmul.f32 %v543, %v643
        %v648 = vmul.f32 %v544, %v641
        %v649 = vmul.f32 %v545, %v643
        %v650 = vmul.f32 %v546, %v641
        %v651 = vmul.f32 %v547, %v643
        %v652 = vmul.f32 %v548, %v641
        %v653 = vmul.f32 %v549, %v643
        %662 = vrot.lane.b32.xlu0 %v646, 126
        %v663 = vpop.permute.xlu0 %662
        %664 = vrot.lane.b32.xlu0 %v647, 126
        %v665 = vpop.permute.xlu0 %664
        %666 = vrot.lane.b32.xlu0 %v648, 126
        %v667 = vpop.permute.xlu0 %666
        %668 = vrot.lane.b32.xlu0 %v649, 126
        %v669 = vpop.permute.xlu0 %668
        %670 = vrot.lane.b32.xlu0 %v650, 126
        %v671 = vpop.permute.xlu0 %670
        %672 = vrot.lane.b32.xlu0 %v651, 126
        %v673 = vpop.permute.xlu0 %672
        %674 = vrot.lane.b32.xlu0 %v652, 126
        %v675 = vpop.permute.xlu0 %674
        %676 = vrot.lane.b32.xlu0 %v653, 126
        %v677 = vpop.permute.xlu0 %676
        %v686 = vadd.f32 %v622, %v663
        %v687 = vadd.f32 %v623, %v665
        %v688 = vadd.f32 %v624, %v667
        %v689 = vadd.f32 %v625, %v669
        %v690 = vadd.f32 %v626, %v671
        %v691 = vadd.f32 %v627, %v673
        %v692 = vadd.f32 %v628, %v675
        %v693 = vadd.f32 %v629, %v677
        %v694 = vsub.f32 %v294, %v314
        %v695 = vsub.f32 %v295, %v315
        %v696 = vmul.f32 %v694, 1.442695
        %v697 = vpow.pop %v696
        %v698 = vmul.f32 %v695, 1.442695
        %v699 = vpow.pop %v698
        %v700 = vadd.f32 %v636, %v697
        %v701 = vadd.f32 %v637, %v699
        %v702 = vld [vmem:[#allocation2 + $0x2] sm:$0xff]
        %v703 = vld [vmem:[#allocation2 + $0xa] sm:$0xff]
        %v704 = vld [vmem:[#allocation2 + $0x1a] sm:$0xff]
        %v705 = vld [vmem:[#allocation2 + $0x22] sm:$0xff]
        %v706 = vld [vmem:[#allocation2 + $0x32] sm:$0xff]
        %v707 = vld [vmem:[#allocation2 + $0x3a] sm:$0xff]
        %v708 = vld [vmem:[#allocation2 + $0x4a] sm:$0xff]
        %v709 = vld [vmem:[#allocation2 + $0x52] sm:$0xff]
        %v710 = vmul.f32 %v702, %v697
        %v711 = vmul.f32 %v703, %v699
        %v712 = vmul.f32 %v704, %v697
        %v713 = vmul.f32 %v705, %v699
        %v714 = vmul.f32 %v706, %v697
        %v715 = vmul.f32 %v707, %v699
        %v716 = vmul.f32 %v708, %v697
        %v717 = vmul.f32 %v709, %v699
        %v718 = vadd.f32 %v686, %v710
        %v719 = vadd.f32 %v687, %v711
        %v720 = vadd.f32 %v688, %v712
        %v721 = vadd.f32 %v689, %v713
        %v722 = vadd.f32 %v690, %v714
        %v723 = vadd.f32 %v691, %v715
        %v724 = vadd.f32 %v692, %v716
        %v725 = vadd.f32 %v693, %v717
        %v726 = vsub.f32 %v296, %v314
        %v727 = vsub.f32 %v297, %v315
        %v728 = vmul.f32 %v726, 1.442695
        %v729 = vpow.pop %v728
        %v730 = vmul.f32 %v727, 1.442695
        %v731 = vpow.pop %v730
        %v732 = vadd.f32 %v700, %v729
        %v733 = vadd.f32 %v701, %v731
        %736 = vrot.lane.b32.xlu0 %v729, 1
        %v737 = vpop.permute.xlu0 %736
        %738 = vrot.lane.b32.xlu0 %v731, 1
        %v739 = vpop.permute.xlu0 %738
        %v742 = vmul.f32 %v702, %v737
        %v743 = vmul.f32 %v703, %v739
        %v744 = vmul.f32 %v704, %v737
        %v745 = vmul.f32 %v705, %v739
        %v746 = vmul.f32 %v706, %v737
        %v747 = vmul.f32 %v707, %v739
        %v748 = vmul.f32 %v708, %v737
        %v749 = vmul.f32 %v709, %v739
        %758 = vrot.lane.b32.xlu0 %v742, 127
        %v759 = vpop.permute.xlu0 %758
        %760 = vrot.lane.b32.xlu0 %v743, 127
        %v761 = vpop.permute.xlu0 %760
        %762 = vrot.lane.b32.xlu0 %v744, 127
        %v763 = vpop.permute.xlu0 %762
        %764 = vrot.lane.b32.xlu0 %v745, 127
        %v765 = vpop.permute.xlu0 %764
        %766 = vrot.lane.b32.xlu0 %v746, 127
        %v767 = vpop.permute.xlu0 %766
        %768 = vrot.lane.b32.xlu0 %v747, 127
        %v769 = vpop.permute.xlu0 %768
        %770 = vrot.lane.b32.xlu0 %v748, 127
        %v771 = vpop.permute.xlu0 %770
        %772 = vrot.lane.b32.xlu0 %v749, 127
        %v773 = vpop.permute.xlu0 %772
        %v782 = vadd.f32 %v718, %v759
        %v783 = vadd.f32 %v719, %v761
        %v784 = vadd.f32 %v720, %v763
        %v785 = vadd.f32 %v721, %v765
        %v786 = vadd.f32 %v722, %v767
        %v787 = vadd.f32 %v723, %v769
        %v788 = vadd.f32 %v724, %v771
        %v789 = vadd.f32 %v725, %v773
        %v790 = vsub.f32 %v298, %v314
        %v791 = vsub.f32 %v299, %v315
        %v792 = vmul.f32 %v790, 1.442695
        %v793 = vpow.pop %v792
        %v794 = vmul.f32 %v791, 1.442695
        %v795 = vpow.pop %v794
        %v796 = vadd.f32 %v732, %v793
        %v797 = vadd.f32 %v733, %v795
        %800 = vrot.lane.b32.xlu0 %v793, 2
        %v801 = vpop.permute.xlu0 %800
        %802 = vrot.lane.b32.xlu0 %v795, 2
        %v803 = vpop.permute.xlu0 %802
        %v806 = vmul.f32 %v702, %v801
        %v807 = vmul.f32 %v703, %v803
        %v808 = vmul.f32 %v704, %v801
        %v809 = vmul.f32 %v705, %v803
        %v810 = vmul.f32 %v706, %v801
        %v811 = vmul.f32 %v707, %v803
        %v812 = vmul.f32 %v708, %v801
        %v813 = vmul.f32 %v709, %v803
        %822 = vrot.lane.b32.xlu0 %v806, 126
        %v823 = vpop.permute.xlu0 %822
        %824 = vrot.lane.b32.xlu0 %v807, 126
        %v825 = vpop.permute.xlu0 %824
        %826 = vrot.lane.b32.xlu0 %v808, 126
        %v827 = vpop.permute.xlu0 %826
        %828 = vrot.lane.b32.xlu0 %v809, 126
        %v829 = vpop.permute.xlu0 %828
        %830 = vrot.lane.b32.xlu0 %v810, 126
        %v831 = vpop.permute.xlu0 %830
        %832 = vrot.lane.b32.xlu0 %v811, 126
        %v833 = vpop.permute.xlu0 %832
        %834 = vrot.lane.b32.xlu0 %v812, 126
        %v835 = vpop.permute.xlu0 %834
        %836 = vrot.lane.b32.xlu0 %v813, 126
        %v837 = vpop.permute.xlu0 %836
        %v846 = vadd.f32 %v782, %v823
        %v847 = vadd.f32 %v783, %v825
        %v848 = vadd.f32 %v784, %v827
        %v849 = vadd.f32 %v785, %v829
        %v850 = vadd.f32 %v786, %v831
        %v851 = vadd.f32 %v787, %v833
        %v852 = vadd.f32 %v788, %v835
        %v853 = vadd.f32 %v789, %v837
        %854 = vst.msk [vmem:[%s259] sm:$0xff] %vm316, %v846
        %855 = vst.msk [vmem:[%s259 + $0x8] sm:$0xff] %vm316, %v847
        %856 = vst.msk [vmem:[%s259 + $0x10] sm:$0xff] %vm316, %v848
        %857 = vst.msk [vmem:[%s259 + $0x18] sm:$0xff] %vm316, %v849
        %858 = vst.msk [vmem:[%s259 + $0x20] sm:$0xff] %vm316, %v850
        %859 = vst.msk [vmem:[%s259 + $0x28] sm:$0xff] %vm316, %v851
        %860 = vst.msk [vmem:[%s259 + $0x30] sm:$0xff] %vm316, %v852
        %861 = vst.msk [vmem:[%s259 + $0x38] sm:$0xff] %vm316, %v853
        %862 = vst.msk [vmem:[%s266] sm:$0xff] %vm316, %v796
        %863 = vst.msk [vmem:[%s266 + $0x8] sm:$0xff] %vm316, %v797
        %s864 = sand.u32 %s88, 1
        %s865 = scalar_lea.sflag [#allocation5], %s864
        %s866 = sand.u32 %s88, 1
        %s867 = smul.addr %s866, 64
        %s868 = scalar_lea.vmem [#allocation8], %s867
        %s869 = sand.u32 %s28, 1
        %s870 = scalar_lea.sflag [#allocation10], %s869
        %s871 = sand.u32 %s114, 1
        %s872 = smul.addr %s871, 16
        %s873 = scalar_lea.vmem [#allocation9], %s872
        %s874 = sand.u32 %s28, 1
        %s875 = scalar_lea.sflag [#allocation10], %s874
        %s876 = sand.u32 %s140, 1
        %s877 = smul.addr %s876, 16
        %s878 = scalar_lea.vmem [#allocation11], %s877
        // Predicated region
        $region37: #{tpu_custom_call.1} parent=27 // pred_check
          %p879 = pneg %p98
        $region38: #{tpu_custom_call.1} parent=27 // pred_check_branch
          %881 = sbr.rel (%p879) target = $region40
        $region39: #{tpu_custom_call.1} parent=27 // pred_region
          %s883 = ssub.s32 1024, 1024
          %884 = vsyncadd %s865, %s883
          %s885 = smul.addr %s28, 8
          %s886 = smul.addr %s885, 128
          %s887 = scalar_lea.hbm %s2, %s886
          %s888 = sshll.u32 %s868, 4
          %s889 = int_to_ptr.vmem [resolvable:$true] %s888
          %894 = dma.vmem_to_hbm [thread:$0]  %s889, 1024, %s887, %s865, 128, 128, 8
        $region40: #{tpu_custom_call.1} parent=27 // pred_fallthru
          _
        // Predicated region
        $region41: #{tpu_custom_call.1} parent=27 // pred_check
          %p895 = pneg %p124
        $region42: #{tpu_custom_call.1} parent=27 // pred_check_branch
          %897 = sbr.rel (%p895) target = $region44
        $region43: #{tpu_custom_call.1} parent=27 // pred_region
          %s899 = ssub.s32 256, 256
          %900 = vsyncadd %s870, %s899
          %s901 = smul.addr %s28, 2
          %s902 = smul.addr %s901, 128
          %s903 = scalar_lea.hbm %s3, %s902
          %s904 = sshll.u32 %s873, 4
          %s905 = int_to_ptr.vmem [resolvable:$true] %s904
          %910 = dma.vmem_to_hbm [thread:$0]  %s905, 256, %s903, %s870, 128, 128, 8
        $region44: #{tpu_custom_call.1} parent=27 // pred_fallthru
          _
        // Predicated region
        $region45: #{tpu_custom_call.1} parent=27 // pred_check
          %p911 = pneg %p150
        $region46: #{tpu_custom_call.1} parent=27 // pred_check_branch
          %913 = sbr.rel (%p911) target = $region48
        $region47: #{tpu_custom_call.1} parent=27 // pred_region
          %s915 = ssub.s32 256, 256
          %916 = vsyncadd %s875, %s915
          %s917 = smul.addr %s28, 2
          %s918 = smul.addr %s917, 128
          %s919 = scalar_lea.hbm %s4, %s918
          %s920 = sshll.u32 %s878, 4
          %s921 = int_to_ptr.vmem [resolvable:$true] %s920
          %926 = dma.vmem_to_hbm [thread:$0]  %s921, 256, %s919, %s875, 128, 128, 8
        $region48: #{tpu_custom_call.1} parent=27 // pred_fallthru
          _
      $region28: #{tpu_custom_call.1} parent=5 // pred_fallthru
        _
      %p927 = scmp.le.s32.totalorder 2, %s23
      // Predicated region
      $region49: #{tpu_custom_call.1} parent=5 // pred_check
        %p928 = pneg %p927
      $region50: #{tpu_custom_call.1} parent=5 // pred_check_branch
        %930 = sbr.rel (%p928) target = $region52
      $region51: #{tpu_custom_call.1} parent=5 // pred_region
        %s931 = ssub.s32 %s23, 2
        // Predicated region
        $region53: #{tpu_custom_call.1} parent=51 // pred_check
          %p932 = pneg %p104
        $region54: #{tpu_custom_call.1} parent=51 // pred_check_branch
          %934 = sbr.rel (%p932) target = $region56
        $region55: #{tpu_custom_call.1} parent=51 // pred_region
          %s935 = sand.u32 %s89, 1
          %s936 = scalar_lea.sflag [#allocation5], %s935
          %s937 = sand.u32 %s89, 1
          %s938 = smul.addr %s937, 64
          %s939 = scalar_lea.vmem [#allocation8], %s938
          %940 = dma.done %s936, 1024
        $region56: #{tpu_custom_call.1} parent=51 // pred_fallthru
          _
        // Predicated region
        $region57: #{tpu_custom_call.1} parent=51 // pred_check
          %p941 = pneg %p130
        $region58: #{tpu_custom_call.1} parent=51 // pred_check_branch
          %943 = sbr.rel (%p941) target = $region60
        $region59: #{tpu_custom_call.1} parent=51 // pred_region
          %s944 = sand.u32 %s29, 1
          %s945 = scalar_lea.sflag [#allocation10], %s944
          %s946 = sand.u32 %s115, 1
          %s947 = smul.addr %s946, 16
          %s948 = scalar_lea.vmem [#allocation9], %s947
          %949 = dma.done %s945, 256
        $region60: #{tpu_custom_call.1} parent=51 // pred_fallthru
          _
        // Predicated region
        $region61: #{tpu_custom_call.1} parent=51 // pred_check
          %p950 = pneg %p156
        $region62: #{tpu_custom_call.1} parent=51 // pred_check_branch
          %952 = sbr.rel (%p950) target = $region64
        $region63: #{tpu_custom_call.1} parent=51 // pred_region
          %s953 = sand.u32 %s29, 1
          %s954 = scalar_lea.sflag [#allocation10], %s953
          %s955 = sand.u32 %s141, 1
          %s956 = smul.addr %s955, 16
          %s957 = scalar_lea.vmem [#allocation11], %s956
          %958 = dma.done %s954, 256
        $region64: #{tpu_custom_call.1} parent=51 // pred_fallthru
          _
      $region52: #{tpu_custom_call.1} parent=5 // pred_fallthru
        _
    $region6: #{tpu_custom_call.1} parent=1 // loop_footer
      %s27 = sadd.s32 1, %s23
    $region7: #{tpu_custom_call.1} parent=1 // loop_footer_branch
      %22 = sbr.rel target = $region3
    $region8: #{tpu_custom_call.1} parent=1 // loop_exit
      _
    %959 = vsyncpa [#allocation4], 1
    %s960 = scalar_lea.sflag [#allocation4], 1
    %961 = vsyncpa %s960, 1
    %962 = vsyncpa [#allocation7], 1
    %s963 = scalar_lea.sflag [#allocation7], 1
    %964 = vsyncpa %s963, 1
    %965 = vsyncpa [#allocation5], 1
    %s966 = scalar_lea.sflag [#allocation5], 1
    %967 = vsyncpa %s966, 1
    %968 = vsyncpa [#allocation10], 1
    %s969 = scalar_lea.sflag [#allocation10], 1
    %970 = vsyncpa %s969, 1

</llo_original>
